<compile_context>
chip_gen: v7x
topology: tpu7x:2x2x1
jax: 0.10.0
libtpu: 0.0.40
codegen_flags: <defaults>
</compile_context>

<pallas_src>
import functools

import jax
import jax.numpy as jnp
from jax.experimental import pallas as pl
from jax.experimental.pallas import tpu as pltpu

_CLS_CHUNK = 512  # max classes per ctx-slab DMA (caps VMEM scratch size)


# ----------------------------------------------------------------------------
# Fused kernel: ctx-slab write into aliased prompts template + both projections
# ----------------------------------------------------------------------------
def _mudpt_fused_kernel(ctx_ref, deep_ref, w_deep_ref, b_deep_ref,
                        w_embed_ref, b_embed_ref, template_ref,
                        prompts_ref, vis_ref, t2v_ref,
                        ctx_slab_ref, dma_sems):
    # template_ref aliases prompts_ref's HBM buffer (prefix/suffix already
    # written at __init__); the kernel never reads it.
    del template_ref

    n_ctx, ctx_dim = ctx_ref.shape
    chunk = ctx_slab_ref.shape[0]
    n_cls = prompts_ref.shape[0]
    n_full, rem = divmod(n_cls, chunk)

    ctx_f32 = ctx_ref[...]

    # ---- prompts: write ONLY the learnable ctx slab (seq positions 1..1+n_ctx)
    #      into the aliased HBM output.  One strided DMA per <=chunk classes,
    #      overlapped with the projection matmuls below. ----
    ctx_slab_ref[...] = jnp.broadcast_to(ctx_f32[None], (chunk, n_ctx, ctx_dim))
    copies = []
    for c in range(n_full):                       # static unroll (tiny count)
        cp = pltpu.make_async_copy(
            ctx_slab_ref,
            prompts_ref.at[pl.ds(c * chunk, chunk), pl.ds(1, n_ctx), :],
            dma_sems.at[c])
        cp.start()
        copies.append(cp)
    if rem:                                       # static remainder DMA
        cp = pltpu.make_async_copy(
            ctx_slab_ref.at[pl.ds(0, rem)],
            prompts_ref.at[pl.ds(n_full * chunk, rem), pl.ds(1, n_ctx), :],
            dma_sems.at[n_full])
        cp.start()
        copies.append(cp)

    # ---- both tiny Linears: bf16 MXU operands, f32 accumulate, f32 VPU bias
    #      add (v5e-safe), final-shaped lane-dense stores. ----
    w_e = w_embed_ref[...]
    w_d = w_deep_ref[...]
    mxu_dtype = w_e.dtype
    t2v_ref[0] = (jnp.dot(ctx_f32.astype(mxu_dtype), w_e,
                          preferred_element_type=jnp.float32)
                  + b_embed_ref[...]).astype(t2v_ref.dtype)
    for d in range(deep_ref.shape[0]):            # depth-1 is small & static
        vis_ref[d] = (jnp.dot(deep_ref[d].astype(mxu_dtype), w_d,
                              preferred_element_type=jnp.float32)
                      + b_deep_ref[...]).astype(vis_ref.dtype)

    # drain the ctx-slab DMAs (hidden behind the matmuls above)
    for cp in copies:
        cp.wait()


@functools.partial(jax.jit, donate_argnums=(6,))
def mudpt_forward(ctx, deep_prompts, w_deep, b_deep, w_embed, b_embed,
                  prompts_template):
    """Single-launch forward; prompts_template is donated & aliased to output."""
    n_ctx, ctx_dim = ctx.shape
    dm1 = deep_prompts.shape[0]
    n_cls, seq_len, _ = prompts_template.shape
    vis_width = w_deep.shape[1]
    dtype = ctx.dtype

    chunk = min(n_cls, _CLS_CHUNK)
    n_full, rem = divmod(n_cls, chunk)
    n_dmas = n_full + (1 if rem else 0)

    vmem = pl.BlockSpec(memory_space=pltpu.MemorySpace.VMEM)
    anyspace = pl.BlockSpec(memory_space=pl.ANY)

    flops = 2 * (dm1 * n_ctx + n_ctx) * ctx_dim * vis_width
    bytes_accessed = (
        ctx.size * ctx.dtype.itemsize
        + deep_prompts.size * deep_prompts.dtype.itemsize
        + w_deep.size * w_deep.dtype.itemsize
        + w_embed.size * w_embed.dtype.itemsize
        + (b_deep.size + b_embed.size) * b_deep.dtype.itemsize
        + n_cls * n_ctx * ctx_dim * dtype.itemsize          # ctx-slab write
        + (dm1 + 1) * n_ctx * vis_width * dtype.itemsize)   # projection outputs

    prompts, visual_prompts, t2v_shared_ctx = pl.pallas_call(
        _mudpt_fused_kernel,
        out_shape=(
            jax.ShapeDtypeStruct((n_cls, seq_len, ctx_dim), dtype),
            jax.ShapeDtypeStruct((dm1, n_ctx, vis_width), dtype),
            jax.ShapeDtypeStruct((1, n_ctx, vis_width), dtype),
        ),
        in_specs=[vmem, vmem, vmem, vmem, vmem, vmem, anyspace],
        out_specs=(anyspace, vmem, vmem),
        scratch_shapes=[
            pltpu.VMEM((chunk, n_ctx, ctx_dim), dtype),
            pltpu.SemaphoreType.DMA((n_dmas,)),
        ],
        input_output_aliases={6: 0},  # prompts_template -> prompts
        cost_estimate=pl.CostEstimate(flops=flops, transcendentals=0,
                                      bytes_accessed=bytes_accessed),
    )(ctx, deep_prompts, w_deep, b_deep, w_embed, b_embed, prompts_template)

    return prompts, t2v_shared_ctx, deep_prompts, visual_prompts


# ----------------------------------------------------------------------------
# Module (parameters initialized deterministically in-script)
# ----------------------------------------------------------------------------
class MuDPTPromptLearnerPallas:
    def __init__(self, key, *, n_cls, n_ctx, ctx_dim, seq_len, depth, vis_width,
                 dtype=jnp.float32):
        assert depth > 0, "PROMPT_DEPTH should be > 0"
        self.n_cls, self.n_ctx, self.ctx_dim = n_cls, n_ctx, ctx_dim
        self.seq_len, self.depth, self.vis_width = seq_len, depth, vis_width
        self.dtype = dtype

        ks = jax.random.split(key, 8)
        # learned context vectors ~ N(0, 0.02)
        self.ctx = (0.02 * jax.random.normal(ks[0], (n_ctx, ctx_dim))).astype(dtype)
        # embed_projection: Linear(ctx_dim -> vis_width), stored (in, out)
        self.embed_proj_w = (0.02 * jax.random.normal(ks[1], (ctx_dim, vis_width))).astype(dtype)
        self.embed_proj_b = (0.02 * jax.random.normal(ks[2], (vis_width,))).astype(dtype)
        # deep prompts (depth-1, n_ctx, ctx_dim) ~ N(0, 0.02)
        self.deep_prompts = (0.02 * jax.random.normal(ks[3], (depth - 1, n_ctx, ctx_dim))).astype(dtype)
        # deep_projections: Linear(ctx_dim -> vis_width)
        self.deep_proj_w = (0.02 * jax.random.normal(ks[4], (ctx_dim, vis_width))).astype(dtype)
        self.deep_proj_b = (0.02 * jax.random.normal(ks[5], (vis_width,))).astype(dtype)
        # TODO(synk): real CLIP tokenizer / token_embedding has no Pallas
        #             equivalent; frozen prefix/suffix buffers are synthesized.
        self.token_prefix = jax.random.normal(ks[6], (n_cls, 1, ctx_dim)).astype(dtype)
        suf_len = seq_len - 1 - n_ctx
        self.token_suffix = jax.random.normal(ks[7], (n_cls, suf_len, ctx_dim)).astype(dtype)

        # ---- one-time packing ----
        # bf16 MXU weights (halves the dominant weight DMA on v6e/v7x; MXU takes
        # bf16 natively on all gens), 2-D lane-dense biases.
        self.deep_proj_w_mxu = self.deep_proj_w.astype(jnp.bfloat16)
        self.embed_proj_w_mxu = self.embed_proj_w.astype(jnp.bfloat16)
        self.deep_proj_b2d = self.deep_proj_b.reshape(1, vis_width)
        self.embed_proj_b2d = self.embed_proj_b.reshape(1, vis_width)
        # persistent prompts template: frozen prefix/suffix written ONCE; the
        # per-call kernel only overwrites the ctx slab (seq positions 1..1+n_ctx).
        tpl = jnp.zeros((n_cls, seq_len, ctx_dim), dtype)
        tpl = tpl.at[:, :1, :].set(self.token_prefix)
        tpl = tpl.at[:, 1 + n_ctx:, :].set(self.token_suffix)
        self.prompts_template = tpl

    def forward(self):
        prompts, t2v, deep, vis = mudpt_forward(
            self.ctx, self.deep_prompts,
            self.deep_proj_w_mxu, self.deep_proj_b2d,
            self.embed_proj_w_mxu, self.embed_proj_b2d,
            self.prompts_template)
        # The template buffer was donated & aliased into `prompts`; keep it for
        # the next call (prefix/suffix regions are never overwritten).  NOTE:
        # the buffer is reused in place across calls — downstream consumers
        # must not hold on to a previous call's `prompts`.
        self.prompts_template = prompts
        return prompts, t2v, deep, vis


# ----------------------------------------------------------------------------
# Main
# ----------------------------------------------------------------------------
if __name__ == "__main__":
    key = jax.random.PRNGKey(0)

    # Small but 128-aligned feature dims (real CLIP: ctx_dim=512, vis_width=768,
    # both 128-multiples) so every store/DMA chunk is lane-dense.
    n_cls, n_ctx, ctx_dim, seq_len = 4, 4, 128, 16
    depth, vis_width = 3, 128

    learner = MuDPTPromptLearnerPallas(
        key, n_cls=n_cls, n_ctx=n_ctx, ctx_dim=ctx_dim, seq_len=seq_len,
        depth=depth, vis_width=vis_width,
    )

    prompts, t2v_shared_ctx, deep_prompts, visual_prompts = jax.block_until_ready(
        learner.forward()
    )

    # --- pure-JAX reference check ---
    ctx_exp = jnp.broadcast_to(learner.ctx[None], (n_cls, n_ctx, ctx_dim))
    prompts_ref = jnp.concatenate(
        [learner.token_prefix, ctx_exp, learner.token_suffix], axis=1
    )
    # projections: reference uses the same bf16-rounded MXU operands, f32 math
    ctx_r = learner.ctx.astype(jnp.bfloat16).astype(jnp.float32)
    deep_r = learner.deep_prompts.astype(jnp.bfloat16).astype(jnp.float32)
    w_e = learner.embed_proj_w_mxu.astype(jnp.float32)
    w_d = learner.deep_proj_w_mxu.astype(jnp.float32)
    t2v_ref = (ctx_r @ w_e + learner.embed_proj_b)[None]
    vp_ref = (deep_r.reshape(-1, ctx_dim) @ w_d + learner.deep_proj_b
              ).reshape(depth - 1, n_ctx, vis_width)

    assert prompts.shape == (n_cls, seq_len, ctx_dim)
    assert t2v_shared_ctx.shape == (1, n_ctx, vis_width)
    assert deep_prompts.shape == (depth - 1, n_ctx, ctx_dim)
    assert visual_prompts.shape == (depth - 1, n_ctx, vis_width)
    assert jnp.allclose(prompts, prompts_ref, atol=1e-5)
    assert jnp.array_equal(deep_prompts, learner.deep_prompts)
    # bf16 MXU inputs -> loosened (deliberately) per review; reference uses the
    # same rounded operands so agreement is actually much tighter than 1e-2.
    assert jnp.allclose(t2v_shared_ctx, t2v_ref, atol=1e-2)
    assert jnp.allclose(visual_prompts, vp_ref, atol=1e-2)

    print("KERNEL_OK")
</pallas_src>

<mosaic_0001>
module attributes {stable_mosaic.version = 11 : i64} {
  func.func @_mudpt_fused_kernel(%arg0: memref<4x128xf32, #tpu.memory_space<vmem>>, %arg1: memref<2x4x128xf32, #tpu.memory_space<vmem>>, %arg2: memref<128x128xbf16, #tpu.memory_space<vmem>>, %arg3: memref<1x128xf32, #tpu.memory_space<vmem>>, %arg4: memref<128x128xbf16, #tpu.memory_space<vmem>>, %arg5: memref<1x128xf32, #tpu.memory_space<vmem>>, %arg6: memref<4x16x128xf32, #tpu.memory_space<any>>, %arg7: memref<4x16x128xf32, #tpu.memory_space<any>>, %arg8: memref<2x4x128xf32, #tpu.memory_space<vmem>>, %arg9: memref<1x4x128xf32, #tpu.memory_space<vmem>>, %arg10: memref<4x4x128xf32, #tpu.memory_space<vmem>>, %arg11: memref<1x!tpu.dma_semaphore, #tpu.memory_space<semaphore_mem>>) attributes {dimension_semantics = [], scalar_prefetch = 0 : i64, scratch_operands = 2 : i64, tpu.core_type = #tpu.core_type<tc>} {
    %c0 = arith.constant 0 : index
    %c0_0 = arith.constant 0 : index
    %0 = vector.load %arg0[%c0, %c0_0] : memref<4x128xf32, #tpu.memory_space<vmem>>, vector<4x128xf32>
    %1 = vector.shape_cast %0 : vector<4x128xf32> to vector<1x4x128xf32>
    %2 = vector.shape_cast %1 : vector<1x4x128xf32> to vector<1x4x128xf32>
    %3 = vector.broadcast %2 : vector<1x4x128xf32> to vector<4x4x128xf32>
    %c0_1 = arith.constant 0 : index
    %c0_2 = arith.constant 0 : index
    %c0_3 = arith.constant 0 : index
    %4 = vector.load %arg10[%c0_1, %c0_2, %c0_3] : memref<4x4x128xf32, #tpu.memory_space<vmem>>, vector<4x4x128xf32>
    tpu.vector_store %arg10[%c0_1, %c0_2, %c0_3], %3 {strides = array<i32>} : memref<4x4x128xf32, #tpu.memory_space<vmem>>, vector<4x4x128xf32>,
    %c0_i32 = arith.constant 0 : i32
    %c0_i32_4 = arith.constant 0 : i32
    %c1_i32 = arith.constant 1 : i32
    %c0_i32_5 = arith.constant 0 : i32
    %5 = tpu.memref_slice %arg7[%c0_i32_4, %c1_i32, %c0_i32_5] : memref<4x16x128xf32, #tpu.memory_space<any>> -> memref<4x4x128xf32, #tpu.memory_space<any>>
    %6 = tpu.memref_slice %arg11[%c0_i32] : memref<1x!tpu.dma_semaphore, #tpu.memory_space<semaphore_mem>> -> memref<1x!tpu.dma_semaphore, #tpu.memory_space<semaphore_mem>>
    %7 = tpu.memref_squeeze %6 : memref<1x!tpu.dma_semaphore, #tpu.memory_space<semaphore_mem>> -> memref<!tpu.dma_semaphore, #tpu.memory_space<semaphore_mem>>
    tpu.enqueue_dma source(%arg10 : memref<4x4x128xf32, #tpu.memory_space<vmem>>) target(%5 : memref<4x4x128xf32, #tpu.memory_space<any>>) target_semaphore(%7 : memref<!tpu.dma_semaphore, #tpu.memory_space<semaphore_mem>>)
    %c0_6 = arith.constant 0 : index
    %c0_7 = arith.constant 0 : index
    %8 = vector.load %arg4[%c0_6, %c0_7] : memref<128x128xbf16, #tpu.memory_space<vmem>>, vector<128x128xbf16>
    %c0_8 = arith.constant 0 : index
    %c0_9 = arith.constant 0 : index
    %9 = vector.load %arg2[%c0_8, %c0_9] : memref<128x128xbf16, #tpu.memory_space<vmem>>, vector<128x128xbf16>
    %10 = arith.truncf %0 : vector<4x128xf32> to vector<4x128xbf16>
    %cst = arith.constant dense<0.000000e+00> : vector<4x128xf32>
    %11 = tpu.matmul %10, %8, %cst {dimension_numbers = #tpu.dot_dimension_numbers<[1], [0], [0], [1], [0, 0, 1, 1], [], []>} : vector<4x128xbf16>, vector<128x128xbf16>, vector<4x128xf32> -> vector<4x128xf32>
    %c0_10 = arith.constant 0 : index
    %c0_11 = arith.constant 0 : index
    %12 = vector.load %arg5[%c0_10, %c0_11] : memref<1x128xf32, #tpu.memory_space<vmem>>, vector<1x128xf32>
    %13 = vector.broadcast %12 : vector<1x128xf32> to vector<4x128xf32>
    %14 = arith.addf %11, %13 : vector<4x128xf32>
    %c0_12 = arith.constant 0 : index
    %c0_13 = arith.constant 0 : index
    %c0_14 = arith.constant 0 : index
    %15 = vector.load %arg9[%c0_12, %c0_13, %c0_14] : memref<1x4x128xf32, #tpu.memory_space<vmem>>, vector<1x4x128xf32>
    %16 = vector.shape_cast %15 : vector<1x4x128xf32> to vector<4x128xf32>
    %17 = vector.shape_cast %14 : vector<4x128xf32> to vector<1x4x128xf32>
    tpu.vector_store %arg9[%c0_12, %c0_13, %c0_14], %17 {strides = array<i32>} : memref<1x4x128xf32, #tpu.memory_space<vmem>>, vector<1x4x128xf32>,
    %c0_15 = arith.constant 0 : index
    %c0_16 = arith.constant 0 : index
    %c0_17 = arith.constant 0 : index
    %18 = vector.load %arg1[%c0_15, %c0_16, %c0_17] : memref<2x4x128xf32, #tpu.memory_space<vmem>>, vector<1x4x128xf32>
    %19 = vector.shape_cast %18 : vector<1x4x128xf32> to vector<4x128xf32>
    %20 = arith.truncf %19 : vector<4x128xf32> to vector<4x128xbf16>
    %cst_18 = arith.constant dense<0.000000e+00> : vector<4x128xf32>
    %21 = tpu.matmul %20, %9, %cst_18 {dimension_numbers = #tpu.dot_dimension_numbers<[1], [0], [0], [1], [0, 0, 1, 1], [], []>} : vector<4x128xbf16>, vector<128x128xbf16>, vector<4x128xf32> -> vector<4x128xf32>
    %c0_19 = arith.constant 0 : index
    %c0_20 = arith.constant 0 : index
    %22 = vector.load %arg3[%c0_19, %c0_20] : memref<1x128xf32, #tpu.memory_space<vmem>>, vector<1x128xf32>
    %23 = vector.broadcast %22 : vector<1x128xf32> to vector<4x128xf32>
    %24 = arith.addf %21, %23 : vector<4x128xf32>
    %c0_21 = arith.constant 0 : index
    %c0_22 = arith.constant 0 : index
    %c0_23 = arith.constant 0 : index
    %25 = vector.load %arg8[%c0_21, %c0_22, %c0_23] : memref<2x4x128xf32, #tpu.memory_space<vmem>>, vector<1x4x128xf32>
    %26 = vector.shape_cast %25 : vector<1x4x128xf32> to vector<4x128xf32>
    %27 = vector.shape_cast %24 : vector<4x128xf32> to vector<1x4x128xf32>
    tpu.vector_store %arg8[%c0_21, %c0_22, %c0_23], %27 {strides = array<i32>} : memref<2x4x128xf32, #tpu.memory_space<vmem>>, vector<1x4x128xf32>,
    %c1 = arith.constant 1 : index
    %c0_24 = arith.constant 0 : index
    %c0_25 = arith.constant 0 : index
    %28 = vector.load %arg1[%c1, %c0_24, %c0_25] : memref<2x4x128xf32, #tpu.memory_space<vmem>>, vector<1x4x128xf32>
    %29 = vector.shape_cast %28 : vector<1x4x128xf32> to vector<4x128xf32>
    %30 = arith.truncf %29 : vector<4x128xf32> to vector<4x128xbf16>
    %cst_26 = arith.constant dense<0.000000e+00> : vector<4x128xf32>
    %31 = tpu.matmul %30, %9, %cst_26 {dimension_numbers = #tpu.dot_dimension_numbers<[1], [0], [0], [1], [0, 0, 1, 1], [], []>} : vector<4x128xbf16>, vector<128x128xbf16>, vector<4x128xf32> -> vector<4x128xf32>
    %c0_27 = arith.constant 0 : index
    %c0_28 = arith.constant 0 : index
    %32 = vector.load %arg3[%c0_27, %c0_28] : memref<1x128xf32, #tpu.memory_space<vmem>>, vector<1x128xf32>
    %33 = vector.broadcast %32 : vector<1x128xf32> to vector<4x128xf32>
    %34 = arith.addf %31, %33 : vector<4x128xf32>
    %c1_29 = arith.constant 1 : index
    %c0_30 = arith.constant 0 : index
    %c0_31 = arith.constant 0 : index
    %35 = vector.load %arg8[%c1_29, %c0_30, %c0_31] : memref<2x4x128xf32, #tpu.memory_space<vmem>>, vector<1x4x128xf32>
    %36 = vector.shape_cast %35 : vector<1x4x128xf32> to vector<4x128xf32>
    %37 = vector.shape_cast %34 : vector<4x128xf32> to vector<1x4x128xf32>
    tpu.vector_store %arg8[%c1_29, %c0_30, %c0_31], %37 {strides = array<i32>} : memref<2x4x128xf32, #tpu.memory_space<vmem>>, vector<1x4x128xf32>,
    %c0_i32_32 = arith.constant 0 : i32
    %c0_i32_33 = arith.constant 0 : i32
    %c1_i32_34 = arith.constant 1 : i32
    %c0_i32_35 = arith.constant 0 : i32
    %38 = tpu.memref_slice %arg7[%c0_i32_33, %c1_i32_34, %c0_i32_35] : memref<4x16x128xf32, #tpu.memory_space<any>> -> memref<4x4x128xf32, #tpu.memory_space<any>>
    %39 = tpu.memref_slice %arg11[%c0_i32_32] : memref<1x!tpu.dma_semaphore, #tpu.memory_space<semaphore_mem>> -> memref<1x!tpu.dma_semaphore, #tpu.memory_space<semaphore_mem>>
    %40 = tpu.memref_squeeze %39 : memref<1x!tpu.dma_semaphore, #tpu.memory_space<semaphore_mem>> -> memref<!tpu.dma_semaphore, #tpu.memory_space<semaphore_mem>>
    tpu.wait_dma2 semaphore(%40 : memref<!tpu.dma_semaphore, #tpu.memory_space<semaphore_mem>>) src(%arg10 : memref<4x4x128xf32, #tpu.memory_space<vmem>>) dst(%38 : memref<4x4x128xf32, #tpu.memory_space<any>>)
    return
  }
}

</mosaic_0001>

<llo_original>
// kernel: mudpt_forward.1
$region0: #{mudpt_forward.1}
  #allocation0 [shape = 'u32[]', space=smem, size = 0x4, offset = 0x4, fixed_abs, tag = 'smem constant byte address 0x4 - core index']
  #allocation1 [shape = 'u32[144,128]{1,0:T(1,128)}', space=vmem, size = 0x12000, scoped, tag = 'internal scratch']
  #allocation2 [shape = 'f32[4,4,128]{2,1,0:T(4,128)}', space=vmem, size = 0x2000, scoped, tag = 'scratch operand']
  #allocation3 [shape = 's32[1]{0}', space=sflag, size = 0x4, scoped, tag = 'scratch operand']
  #allocation12 [shape = 's32[]', space=sflag, size = 0x4, offset = 0, fixed_abs, tag = 'sflag constant byte address 0x0 - dummy sync flag']
  %s0 = inlined_call_operand.vmem [shape: f32[4,128], index: 0, kind: input, shape index: {}]
  %s1 = inlined_call_operand.vmem [shape: f32[2,4,128], index: 1, kind: input, shape index: {}]
  %s2 = inlined_call_operand.hbm [shape: bf16[128,128], index: 2, kind: input, shape index: {}]
  %s3 = inlined_call_operand.vmem [shape: f32[1,128], index: 3, kind: input, shape index: {}]
  %s4 = inlined_call_operand.hbm [shape: bf16[128,128], index: 4, kind: input, shape index: {}]
  %s5 = inlined_call_operand.vmem [shape: f32[1,128], index: 5, kind: input, shape index: {}]
  %s6 = inlined_call_operand.hbm [shape: f32[4,16,128], index: 6, kind: input, shape index: {}, may-alias: {6,7}]
  %s7 = inlined_call_operand.hbm [shape: f32[4,16,128], index: 7, kind: output, shape index: {0}, may-alias: {6,7}]
  %s8 = inlined_call_operand.hbm [shape: f32[2,4,128], index: 8, kind: output, shape index: {1}]
  %s9 = inlined_call_operand.hbm [shape: f32[1,4,128], index: 9, kind: output, shape index: {2}]
  %10 = xla_tuple %s7, %s8, %s9
  %s11 = sld [smem:[#allocation0]]
  $region50: #{mudpt_forward.1} parent=0
    _
  %s13 = ssub.s32 1, %s11
  %s14 = scalar_select 0, %s13, %s11
  $region1: #{mudpt_forward.1} parent=0
    #allocation4 [shape = 'u8[32768]{0}', space=vmem, size = 0x8000, scoped, tag = 'input window, operand 2, single buffered']
    #allocation5 [shape = 's32[1]{0}', space=sflag, size = 0x4, scoped, tag = 'scoped memory for mudpt_forward.1']
    #allocation6 [shape = 's32[1]{0}', space=sflag, size = 0x4, scoped, tag = 'scoped memory for mudpt_forward.1']
    #allocation7 [shape = 'u8[32768]{0}', space=vmem, size = 0x8000, scoped, tag = 'input window, operand 4, single buffered']
    #allocation8 [shape = 's32[1]{0}', space=sflag, size = 0x4, scoped, tag = 'scoped memory for mudpt_forward.1']
    #allocation9 [shape = 'u8[4096]{0}', space=vmem, size = 0x1000, scoped, tag = 'output window, operand 1, single buffered']
    #allocation10 [shape = 'u8[2048]{0}', space=vmem, size = 0x800, scoped, tag = 'output window, operand 2, single buffered']
    #allocation11 [shape = 's32[1]{0}', space=sflag, size = 0x4, scoped, tag = 'scoped memory for mudpt_forward.1']
    %15 = vsyncpa [#allocation5], 0
    %16 = vsyncpa [#allocation8], 0
    %17 = vsyncpa [#allocation6], 0
    %18 = vsyncpa [#allocation11], 0
    // Predicated region
    $region2: #{mudpt_forward.1} parent=1 // pred_check
      _
    $region3: #{mudpt_forward.1} parent=1 // pred_check_branch
      %20 = sbr.rel (0) target = $region5
    $region4: #{mudpt_forward.1} parent=1 // pred_region
      _
    $region5: #{mudpt_forward.1} parent=1 // pred_fallthru
      _
    // Predicated region
    $region6: #{mudpt_forward.1} parent=1 // pred_check
      _
    $region7: #{mudpt_forward.1} parent=1 // pred_check_branch
      %22 = sbr.rel (0) target = $region9
    $region8: #{mudpt_forward.1} parent=1 // pred_region
      _
    $region9: #{mudpt_forward.1} parent=1 // pred_fallthru
      _
    // Predicated region
    $region10: #{mudpt_forward.1} parent=1 // pred_check
      _
    $region11: #{mudpt_forward.1} parent=1 // pred_check_branch
      %24 = sbr.rel (0) target = $region13
    $region12: #{mudpt_forward.1} parent=1 // pred_region
      %s26 = ssub.s32 1024, 1024
      %27 = vsyncadd [#allocation5], %s26
      %s28 = sshll.u32 [#allocation4], 4
      %s29 = int_to_ptr.vmem [resolvable:$true] %s28
      %34 = dma.hbm_to_vmem [thread:$0]  %s2, 1024, %s29, [#allocation5], 64, 64, 4
    $region13: #{mudpt_forward.1} parent=1 // pred_fallthru
      _
    // Predicated region
    $region14: #{mudpt_forward.1} parent=1 // pred_check
      _
    $region15: #{mudpt_forward.1} parent=1 // pred_check_branch
      %36 = sbr.rel (0) target = $region17
    $region16: #{mudpt_forward.1} parent=1 // pred_region
      _
    $region17: #{mudpt_forward.1} parent=1 // pred_fallthru
      _
    // Predicated region
    $region18: #{mudpt_forward.1} parent=1 // pred_check
      _
    $region19: #{mudpt_forward.1} parent=1 // pred_check_branch
      %38 = sbr.rel (0) target = $region21
    $region20: #{mudpt_forward.1} parent=1 // pred_region
      %s40 = ssub.s32 1024, 1024
      %41 = vsyncadd [#allocation8], %s40
      %s42 = sshll.u32 [#allocation7], 4
      %s43 = int_to_ptr.vmem [resolvable:$true] %s42
      %48 = dma.hbm_to_vmem [thread:$0]  %s4, 1024, %s43, [#allocation8], 64, 64, 4
    $region21: #{mudpt_forward.1} parent=1 // pred_fallthru
      _
    // Predicated region
    $region22: #{mudpt_forward.1} parent=1 // pred_check
      _
    $region23: #{mudpt_forward.1} parent=1 // pred_check_branch
      %50 = sbr.rel (0) target = $region25
    $region24: #{mudpt_forward.1} parent=1 // pred_region
      _
    $region25: #{mudpt_forward.1} parent=1 // pred_fallthru
      _
    // Predicated region
    $region26: #{mudpt_forward.1} parent=1 // pred_check
      _
    $region27: #{mudpt_forward.1} parent=1 // pred_check_branch
      %52 = sbr.rel (0) target = $region29
    $region28: #{mudpt_forward.1} parent=1 // pred_region
      %53 = dma.done [#allocation5], 1024
    $region29: #{mudpt_forward.1} parent=1 // pred_fallthru
      _
    // Predicated region
    $region30: #{mudpt_forward.1} parent=1 // pred_check
      _
    $region31: #{mudpt_forward.1} parent=1 // pred_check_branch
      %55 = sbr.rel (0) target = $region33
    $region32: #{mudpt_forward.1} parent=1 // pred_region
      %56 = dma.done [#allocation8], 1024
    $region33: #{mudpt_forward.1} parent=1 // pred_fallthru
      _
    %v58 = vld [vmem:[%s0] sm:$0xf]
    %59 = vst [vmem:[#allocation2] sm:$0xf] %v58
    %60 = vst [vmem:[#allocation2 + $0x4] sm:$0xf] %v58
    %61 = vst [vmem:[#allocation2 + $0x8] sm:$0xf] %v58
    %62 = vst [vmem:[#allocation2 + $0xc] sm:$0xf] %v58
    %s63 = scalar_lea.hbm %s7, 16
    %s65 = sshll.u32 [#allocation2], 4
    %s66 = int_to_ptr.vmem [resolvable:$true] %s65
    %68 = dma.vmem_to_hbm [thread:$0]  %s66, 256, %s63, [#allocation3], 64, 256, 4
    %v69 = vld [vmem:[#allocation7] sm:$0xf]
    %v70 = vld [vmem:[#allocation7 + $0x4] sm:$0xf]
    %v71 = vld [vmem:[#allocation7 + $0x8] sm:$0xf]
    %v72 = vld [vmem:[#allocation7 + $0xc] sm:$0xf]
    %v73 = vld [vmem:[#allocation7 + $0x10] sm:$0xf]
    %v74 = vld [vmem:[#allocation7 + $0x14] sm:$0xf]
    %v75 = vld [vmem:[#allocation7 + $0x18] sm:$0xf]
    %v76 = vld [vmem:[#allocation7 + $0x1c] sm:$0xf]
    %v77 = vld [vmem:[#allocation7 + $0x20] sm:$0xf]
    %v78 = vld [vmem:[#allocation7 + $0x24] sm:$0xf]
    %v79 = vld [vmem:[#allocation7 + $0x28] sm:$0xf]
    %v80 = vld [vmem:[#allocation7 + $0x2c] sm:$0xf]
    %v81 = vld [vmem:[#allocation7 + $0x30] sm:$0xf]
    %v82 = vld [vmem:[#allocation7 + $0x34] sm:$0xf]
    %v83 = vld [vmem:[#allocation7 + $0x38] sm:$0xf]
    %v84 = vld [vmem:[#allocation7 + $0x3c] sm:$0xf]
    %v85 = vld [vmem:[#allocation4] sm:$0xf]
    %v86 = vld [vmem:[#allocation4 + $0x4] sm:$0xf]
    %v87 = vld [vmem:[#allocation4 + $0x8] sm:$0xf]
    %v88 = vld [vmem:[#allocation4 + $0xc] sm:$0xf]
    %v89 = vld [vmem:[#allocation4 + $0x10] sm:$0xf]
    %v90 = vld [vmem:[#allocation4 + $0x14] sm:$0xf]
    %v91 = vld [vmem:[#allocation4 + $0x18] sm:$0xf]
    %v92 = vld [vmem:[#allocation4 + $0x1c] sm:$0xf]
    %v93 = vld [vmem:[#allocation4 + $0x20] sm:$0xf]
    %v94 = vld [vmem:[#allocation4 + $0x24] sm:$0xf]
    %v95 = vld [vmem:[#allocation4 + $0x28] sm:$0xf]
    %v96 = vld [vmem:[#allocation4 + $0x2c] sm:$0xf]
    %v97 = vld [vmem:[#allocation4 + $0x30] sm:$0xf]
    %v98 = vld [vmem:[#allocation4 + $0x34] sm:$0xf]
    %v99 = vld [vmem:[#allocation4 + $0x38] sm:$0xf]
    %v100 = vld [vmem:[#allocation4 + $0x3c] sm:$0xf]
    %v101 = vpack.c.bf16 %v58, %v58
    %v102 = vld [vmem:[%s5] sm:$0x1]
    %v104 = vlaneseq
    %v105 = vshrl.u32 %v104, 7
    %v106 = vsub.s32 0, %v105
    %v107 = vrot.slane %v102, %v106
    %v125 = vunpack.c.l.b16 %v69
    %v126 = vunpack.c.l.b16 %v70
    %v127 = vunpack.c.l.b16 %v71
    %v128 = vunpack.c.l.b16 %v72
    %v129 = vunpack.c.l.b16 %v73
    %v130 = vunpack.c.l.b16 %v74
    %v131 = vunpack.c.l.b16 %v75
    %v132 = vunpack.c.l.b16 %v76
    %v133 = vunpack.c.l.b16 %v77
    %v134 = vunpack.c.l.b16 %v78
    %v135 = vunpack.c.l.b16 %v79
    %v136 = vunpack.c.l.b16 %v80
    %v137 = vunpack.c.l.b16 %v81
    %v138 = vunpack.c.l.b16 %v82
    %v139 = vunpack.c.l.b16 %v83
    %v140 = vunpack.c.l.b16 %v84
    %v141 = vpack.c.b16 %v126, %v125
    %v142 = vpack.c.b16 %v128, %v127
    %v143 = vpack.c.b16 %v130, %v129
    %v144 = vpack.c.b16 %v132, %v131
    %v145 = vpack.c.b16 %v134, %v133
    %v146 = vpack.c.b16 %v136, %v135
    %v147 = vpack.c.b16 %v138, %v137
    %v148 = vpack.c.b16 %v140, %v139
    %157 = vmatprep.subr.bf16.mxu0 0
    %158 = vmatpush1.bf16.msra.mxu0 %v141
    %159 = vmatprep.subr.bf16.mxu0 0
    %160 = vmatpush1.bf16.msra.mxu0 %v142
    %161 = vmatprep.subr.bf16.mxu0 0
    %162 = vmatpush1.bf16.msra.mxu0 %v143
    %163 = vmatprep.subr.bf16.mxu0 0
    %164 = vmatpush1.bf16.msra.mxu0 %v144
    %165 = vmatprep.subr.bf16.mxu0 0
    %166 = vmatpush1.bf16.msra.mxu0 %v145
    %167 = vmatprep.subr.bf16.mxu0 0
    %168 = vmatpush1.bf16.msra.mxu0 %v146
    %169 = vmatprep.subr.bf16.mxu0 0
    %170 = vmatpush1.bf16.msra.mxu0 %v147
    %171 = vmatprep.subr.bf16.mxu0 0
    %172 = vmatpush1.bf16.msra.mxu0 %v148
    %173 = vmatprep.subr.bf16.mxu0 0
    %174 = vmatpush1.bf16.msra.mxu0 0
    %175 = vmatprep.subr.bf16.mxu0 0
    %176 = vmatpush1.bf16.msra.mxu0 0
    %177 = vmatprep.subr.bf16.mxu0 0
    %178 = vmatpush1.bf16.msra.mxu0 0
    %179 = vmatprep.subr.bf16.mxu0 0
    %180 = vmatpush1.bf16.msra.mxu0 0
    %181 = vmatprep.subr.bf16.mxu0 0
    %182 = vmatpush1.bf16.msra.mxu0 0
    %183 = vmatprep.subr.bf16.mxu0 0
    %184 = vmatpush1.bf16.msra.mxu0 0
    %185 = vmatprep.subr.bf16.mxu0 0
    %186 = vmatpush1.bf16.msra.mxu0 0
    %187 = vmatprep.subr.bf16.mxu0 0
    %188 = vmatpush1.bf16.msra.mxu0 0
    %189 = vmatprep.mubr.bf16.mxu0 0
    %190 = vmatmul.mubr.bf16.gmra.mrb[0].mxu0 %v101
    %v191 = vpop.f32.mrb[0].mxu0
    %v192 = vadd.f32 %v107, %v191
    %v193 = vpop.f32.mrb[0].mxu0
    %v194 = vpop.f32.mrb[0].mxu0
    %v195 = vpop.f32.mrb[0].mxu0
    %196 = vdwg.mxu0
    %197 = vst [vmem:[#allocation10] sm:$0xf] %v192
    %v198 = vld [vmem:[%s1] sm:$0xf]
    %v199 = vpack.c.bf16 %v198, %v198
    %v200 = vld [vmem:[%s3] sm:$0x1]
    %v202 = vlaneseq
    %v203 = vshrl.u32 %v202, 7
    %v204 = vsub.s32 0, %v203
    %v205 = vrot.slane %v200, %v204
    %v223 = vunpack.c.l.b16 %v85
    %v224 = vunpack.c.l.b16 %v86
    %v225 = vunpack.c.l.b16 %v87
    %v226 = vunpack.c.l.b16 %v88
    %v227 = vunpack.c.l.b16 %v89
    %v228 = vunpack.c.l.b16 %v90
    %v229 = vunpack.c.l.b16 %v91
    %v230 = vunpack.c.l.b16 %v92
    %v231 = vunpack.c.l.b16 %v93
    %v232 = vunpack.c.l.b16 %v94
    %v233 = vunpack.c.l.b16 %v95
    %v234 = vunpack.c.l.b16 %v96
    %v235 = vunpack.c.l.b16 %v97
    %v236 = vunpack.c.l.b16 %v98
    %v237 = vunpack.c.l.b16 %v99
    %v238 = vunpack.c.l.b16 %v100
    %v239 = vpack.c.b16 %v224, %v223
    %v240 = vpack.c.b16 %v226, %v225
    %v241 = vpack.c.b16 %v228, %v227
    %v242 = vpack.c.b16 %v230, %v229
    %v243 = vpack.c.b16 %v232, %v231
    %v244 = vpack.c.b16 %v234, %v233
    %v245 = vpack.c.b16 %v236, %v235
    %v246 = vpack.c.b16 %v238, %v237
    %255 = vmatprep.subr.bf16.mxu0 0
    %256 = vmatpush1.bf16.msra.mxu0 %v239
    %257 = vmatprep.subr.bf16.mxu0 0
    %258 = vmatpush1.bf16.msra.mxu0 %v240
    %259 = vmatprep.subr.bf16.mxu0 0
    %260 = vmatpush1.bf16.msra.mxu0 %v241
    %261 = vmatprep.subr.bf16.mxu0 0
    %262 = vmatpush1.bf16.msra.mxu0 %v242
    %263 = vmatprep.subr.bf16.mxu0 0
    %264 = vmatpush1.bf16.msra.mxu0 %v243
    %265 = vmatprep.subr.bf16.mxu0 0
    %266 = vmatpush1.bf16.msra.mxu0 %v244
    %267 = vmatprep.subr.bf16.mxu0 0
    %268 = vmatpush1.bf16.msra.mxu0 %v245
    %269 = vmatprep.subr.bf16.mxu0 0
    %270 = vmatpush1.bf16.msra.mxu0 %v246
    %271 = vmatprep.subr.bf16.mxu0 0
    %272 = vmatpush1.bf16.msra.mxu0 0
    %273 = vmatprep.subr.bf16.mxu0 0
    %274 = vmatpush1.bf16.msra.mxu0 0
    %275 = vmatprep.subr.bf16.mxu0 0
    %276 = vmatpush1.bf16.msra.mxu0 0
    %277 = vmatprep.subr.bf16.mxu0 0
    %278 = vmatpush1.bf16.msra.mxu0 0
    %279 = vmatprep.subr.bf16.mxu0 0
    %280 = vmatpush1.bf16.msra.mxu0 0
    %281 = vmatprep.subr.bf16.mxu0 0
    %282 = vmatpush1.bf16.msra.mxu0 0
    %283 = vmatprep.subr.bf16.mxu0 0
    %284 = vmatpush1.bf16.msra.mxu0 0
    %285 = vmatprep.subr.bf16.mxu0 0
    %286 = vmatpush1.bf16.msra.mxu0 0
    %287 = vmatprep.mubr.bf16.mxu0 0
    %288 = vmatmul.mubr.bf16.gmra.mrb[0].mxu0 %v199
    %v289 = vpop.f32.mrb[0].mxu0
    %v290 = vadd.f32 %v205, %v289
    %v291 = vpop.f32.mrb[0].mxu0
    %v292 = vpop.f32.mrb[0].mxu0
    %v293 = vpop.f32.mrb[0].mxu0
    %294 = vdwg.mxu0
    %295 = vst [vmem:[#allocation9] sm:$0xf] %v290
    %s296 = scalar_lea.vmem %s1, 4
    %v297 = vld [vmem:[%s296] sm:$0xf]
    %v298 = vpack.c.bf16 %v297, %v297
    %v299 = vld [vmem:[%s3] sm:$0x1]
    %v301 = vlaneseq
    %v302 = vshrl.u32 %v301, 7
    %v303 = vsub.s32 0, %v302
    %v304 = vrot.slane %v299, %v303
    %306 = vmatprep.subr.bf16.mxu0 0
    %307 = vmatpush1.bf16.msra.mxu0 %v239
    %308 = vmatprep.subr.bf16.mxu0 0
    %309 = vmatpush1.bf16.msra.mxu0 %v240
    %310 = vmatprep.subr.bf16.mxu0 0
    %311 = vmatpush1.bf16.msra.mxu0 %v241
    %312 = vmatprep.subr.bf16.mxu0 0
    %313 = vmatpush1.bf16.msra.mxu0 %v242
    %314 = vmatprep.subr.bf16.mxu0 0
    %315 = vmatpush1.bf16.msra.mxu0 %v243
    %316 = vmatprep.subr.bf16.mxu0 0
    %317 = vmatpush1.bf16.msra.mxu0 %v244
    %318 = vmatprep.subr.bf16.mxu0 0
    %319 = vmatpush1.bf16.msra.mxu0 %v245
    %320 = vmatprep.subr.bf16.mxu0 0
    %321 = vmatpush1.bf16.msra.mxu0 %v246
    %322 = vmatprep.subr.bf16.mxu0 0
    %323 = vmatpush1.bf16.msra.mxu0 0
    %324 = vmatprep.subr.bf16.mxu0 0
    %325 = vmatpush1.bf16.msra.mxu0 0
    %326 = vmatprep.subr.bf16.mxu0 0
    %327 = vmatpush1.bf16.msra.mxu0 0
    %328 = vmatprep.subr.bf16.mxu0 0
    %329 = vmatpush1.bf16.msra.mxu0 0
    %330 = vmatprep.subr.bf16.mxu0 0
    %331 = vmatpush1.bf16.msra.mxu0 0
    %332 = vmatprep.subr.bf16.mxu0 0
    %333 = vmatpush1.bf16.msra.mxu0 0
    %334 = vmatprep.subr.bf16.mxu0 0
    %335 = vmatpush1.bf16.msra.mxu0 0
    %336 = vmatprep.subr.bf16.mxu0 0
    %337 = vmatpush1.bf16.msra.mxu0 0
    %338 = vmatprep.mubr.bf16.mxu0 0
    %339 = vmatmul.mubr.bf16.gmra.mrb[0].mxu0 %v298
    %v340 = vpop.f32.mrb[0].mxu0
    %v341 = vadd.f32 %v304, %v340
    %v342 = vpop.f32.mrb[0].mxu0
    %v343 = vpop.f32.mrb[0].mxu0
    %v344 = vpop.f32.mrb[0].mxu0
    %345 = vdwg.mxu0
    %s346 = scalar_lea.vmem [#allocation9], 4
    %347 = vst [vmem:[%s346] sm:$0xf] %v341
    %s348 = smul.u32 4, 4
    %s349 = smul.u32 %s348, 1
    %s350 = sshll.u32 %s349, 4
    %351 = dma.done [#allocation3], %s350
    // Predicated region
    $region34: #{mudpt_forward.1} parent=1 // pred_check
      _
    $region35: #{mudpt_forward.1} parent=1 // pred_check_branch
      %353 = sbr.rel (0) target = $region37
    $region36: #{mudpt_forward.1} parent=1 // pred_region
      %s355 = ssub.s32 128, 128
      %356 = vsyncadd [#allocation6], %s355
      %s357 = sshll.u32 [#allocation9], 4
      %s358 = int_to_ptr.vmem [resolvable:$true] %s357
      %363 = dma.vmem_to_hbm [thread:$0]  %s358, 128, %s8, [#allocation6], 64, 64, 4
    $region37: #{mudpt_forward.1} parent=1 // pred_fallthru
      _
    // Predicated region
    $region38: #{mudpt_forward.1} parent=1 // pred_check
      _
    $region39: #{mudpt_forward.1} parent=1 // pred_check_branch
      %365 = sbr.rel (0) target = $region41
    $region40: #{mudpt_forward.1} parent=1 // pred_region
      %s367 = ssub.s32 64, 64
      %368 = vsyncadd [#allocation11], %s367
      %s370 = sshll.u32 [#allocation10], 4
      %s371 = int_to_ptr.vmem [resolvable:$true] %s370
      %373 = dma.vmem_to_hbm [thread:$0]  %s371, 64, %s9, [#allocation11]
    $region41: #{mudpt_forward.1} parent=1 // pred_fallthru
      _
    // Predicated region
    $region42: #{mudpt_forward.1} parent=1 // pred_check
      _
    $region43: #{mudpt_forward.1} parent=1 // pred_check_branch
      %375 = sbr.rel (0) target = $region45
    $region44: #{mudpt_forward.1} parent=1 // pred_region
      %376 = dma.done [#allocation6], 128
    $region45: #{mudpt_forward.1} parent=1 // pred_fallthru
      _
    // Predicated region
    $region46: #{mudpt_forward.1} parent=1 // pred_check
      _
    $region47: #{mudpt_forward.1} parent=1 // pred_check_branch
      %378 = sbr.rel (0) target = $region49
    $region48: #{mudpt_forward.1} parent=1 // pred_region
      %379 = dma.done [#allocation11], 64
    $region49: #{mudpt_forward.1} parent=1 // pred_fallthru
      _
    %380 = vsyncpa [#allocation5], 1
    %381 = vsyncpa [#allocation8], 1
    %382 = vsyncpa [#allocation6], 1
    %383 = vsyncpa [#allocation11], 1
  %384 = vsyncmov [#allocation3]
  %s385 = vpop.sfrf %384
  %p386 = scmp.eq.s32.totalorder %s385, 0
  %p387 = pneg %p386
  %389 = shalt.err (%p387)

</llo_original>
